<compile_context>
chip_gen: v7x
topology: tpu7x:2x2x1
jax: 0.10.0
libtpu: 0.0.40
codegen_flags: <defaults>
</compile_context>

<pallas_src>
import functools

import jax
import jax.numpy as jnp
from jax.experimental import pallas as pl
from jax.experimental.pallas import tpu as pltpu

BN_EPS = 1e-5


# ------------------------------ device config -------------------------------
def _device_cfg():
    kind = ""
    try:
        kind = jax.devices()[0].device_kind.lower()
    except Exception:
        pass
    if "v7" in kind:                          # 64 MiB physical VMEM per TC
        return 1024, 40 * 1024 * 1024, 8 * 1024 * 1024
    if "v5e" in kind or "v5 lite" in kind or "v5lite" in kind:
        return 1024, 64 * 1024 * 1024, 12 * 1024 * 1024
    return 2048, 64 * 1024 * 1024, 16 * 1024 * 1024   # v6e / v5p / v4


_MAX_TILE_M, _VMEM_LIMIT, _TILE_BYTES_BUDGET = _device_cfg()


def _round_up(x, m):
    return (x + m - 1) // m * m


def _tiling(m, k_pad, n_pad):
    """Largest M tile whose double-buffered resident blocks (bf16 x block,
    bf16 y block, bf16 weights, f32 per-channel vectors) fit the budget."""
    fixed = 2 * (2 * k_pad * n_pad) + 8 * 4 * n_pad     # weights x2 buf + vectors
    per_row = 2 * (2 * k_pad + 2 * n_pad)               # x + y blocks, x2 buffers
    rows_cap = max(16, (max(_TILE_BYTES_BUDGET - fixed, 0) // per_row) // 16 * 16)
    max_tile = min(_MAX_TILE_M, rows_cap)
    grid_m = max(1, -(-m // max_tile))
    tile_m = _round_up(-(-m // grid_m), 16)
    return tile_m, grid_m, grid_m * tile_m


def _pad2(a, rows, cols):
    r, c = a.shape
    return jnp.pad(a, ((0, rows - r), (0, cols - c)))


def _row_vec(v, n_pad):
    return jnp.pad(v.astype(jnp.float32), (0, n_pad - v.shape[0])).reshape(1, n_pad)


def _cparams(semantics):
    return pltpu.CompilerParams(dimension_semantics=semantics,
                                vmem_limit_bytes=_VMEM_LIMIT)


# -------------------------------- kernels -----------------------------------
def _mm_bias_act_kernel(x_ref, w_ref, b_ref, o_ref, *, act):
    # bf16 operands -> f32 MXU accumulation; bias / activation in f32.
    y = jnp.dot(x_ref[...], w_ref[...], preferred_element_type=jnp.float32)
    y = y + b_ref[...]
    if act == "sigmoid":
        y = jax.nn.sigmoid(y)
    o_ref[...] = y.astype(o_ref.dtype)


def _mm_bn_relu_fused_kernel(x_ref, w_ref, b_ref, g_ref, bt_ref, o_ref, *,
                             m_real, mask_rows):
    # Whole-M single-tile fusion: matmul + bias + exact batch stats +
    # normalize + ReLU in one launch.  Stats use the in-register f32 result.
    y = jnp.dot(x_ref[...], w_ref[...], preferred_element_type=jnp.float32)
    y = y + b_ref[...]
    if mask_rows:                               # only when M needed padding
        row = jax.lax.broadcasted_iota(jnp.int32, y.shape, 0)
        ys = jnp.where(row < m_real, y, 0.0)
    else:
        ys = y
    inv_m = 1.0 / m_real
    mu = jnp.sum(ys, axis=0, keepdims=True) * inv_m
    var = jnp.sum(ys * ys, axis=0, keepdims=True) * inv_m - mu * mu
    scale = jax.lax.rsqrt(var + BN_EPS) * g_ref[...]
    o = (y - mu) * scale + bt_ref[...]
    o_ref[...] = jnp.maximum(o, 0.0).astype(o_ref.dtype)


def _bn_stats_relu_kernel(y_ref, g_ref, bt_ref, o_ref, *, m_real):
    # Whole-M fused batch stats + normalize + ReLU over a pre-formed (M, C)
    # activation (post ConvTranspose-s2 depth-to-space).  Padded rows are
    # zeros so no row mask is needed for the sums.
    y = y_ref[...].astype(jnp.float32)
    inv_m = 1.0 / m_real
    mu = jnp.sum(y, axis=0, keepdims=True) * inv_m
    var = jnp.sum(y * y, axis=0, keepdims=True) * inv_m - mu * mu
    scale = jax.lax.rsqrt(var + BN_EPS) * g_ref[...]
    o = (y - mu) * scale + bt_ref[...]
    o_ref[...] = jnp.maximum(o, 0.0).astype(o_ref.dtype)


def _mm_bias_partial_stats_kernel(x_ref, w_ref, b_ref, y_ref, ps_ref, pss_ref,
                                  *, m_real, tile_m, mask_rows):
    # Fallback for grid_m > 1: per-tile matmul + bias (bf16 store) and
    # per-tile partial sum / sum-of-squares written to this tile's own rows,
    # so the M grid axis stays "parallel" (megacore-shardable).
    y = jnp.dot(x_ref[...], w_ref[...], preferred_element_type=jnp.float32)
    y = y + b_ref[...]
    y_ref[...] = y.astype(y_ref.dtype)
    if mask_rows:
        row = (pl.program_id(0) * tile_m
               + jax.lax.broadcasted_iota(jnp.int32, y.shape, 0))
        y = jnp.where(row < m_real, y, 0.0)
    ps_ref[...] = jnp.broadcast_to(jnp.sum(y, axis=0, keepdims=True),
                                   ps_ref.shape)
    pss_ref[...] = jnp.broadcast_to(jnp.sum(y * y, axis=0, keepdims=True),
                                    pss_ref.shape)


def _partial_stats_kernel(y_ref, ps_ref, pss_ref):
    # Fallback partial stats over a zero-padded bf16 activation ("parallel").
    y = y_ref[...].astype(jnp.float32)
    ps_ref[...] = jnp.broadcast_to(jnp.sum(y, axis=0, keepdims=True),
                                   ps_ref.shape)
    pss_ref[...] = jnp.broadcast_to(jnp.sum(y * y, axis=0, keepdims=True),
                                    pss_ref.shape)


def _bn_relu_kernel(y_ref, mean_ref, var_ref, g_ref, bt_ref, o_ref):
    y = y_ref[...].astype(jnp.float32)
    scale = jax.lax.rsqrt(var_ref[...] + BN_EPS) * g_ref[...]
    o = (y - mean_ref[...]) * scale + bt_ref[...]
    o_ref[...] = jnp.maximum(o, 0.0).astype(o_ref.dtype)


# ------------------------------ pallas wrappers ------------------------------
def matmul_bias_act(x, w, b, *, act="none", out_dtype=jnp.bfloat16):
    m, k = x.shape
    n = w.shape[1]
    k_pad = _round_up(k, 128)
    n_pad = _round_up(n, 128)
    tile_m, grid_m, m_pad = _tiling(m, k_pad, n_pad)

    xp = _pad2(x.astype(jnp.bfloat16), m_pad, k_pad)
    wp = _pad2(w.astype(jnp.bfloat16), k_pad, n_pad)
    bp = _row_vec(b, n_pad)

    out = pl.pallas_call(
        functools.partial(_mm_bias_act_kernel, act=act),
        out_shape=jax.ShapeDtypeStruct((m_pad, n_pad), out_dtype),
        grid=(grid_m,),
        in_specs=[pl.BlockSpec((tile_m, k_pad), lambda i: (i, 0)),
                  pl.BlockSpec((k_pad, n_pad), lambda i: (0, 0)),
                  pl.BlockSpec((1, n_pad), lambda i: (0, 0))],
        out_specs=pl.BlockSpec((tile_m, n_pad), lambda i: (i, 0)),
        compiler_params=_cparams(("parallel",)),
    )(xp, wp, bp)
    return out[:m, :n]


def _bn_relu_apply(y_pad, mean, var, g, bt, tile_m, grid_m, out_dtype):
    m_pad, n_pad = y_pad.shape
    return pl.pallas_call(
        _bn_relu_kernel,
        out_shape=jax.ShapeDtypeStruct((m_pad, n_pad), out_dtype),
        grid=(grid_m,),
        in_specs=[pl.BlockSpec((tile_m, n_pad), lambda i: (i, 0)),
                  pl.BlockSpec((1, n_pad), lambda i: (0, 0)),
                  pl.BlockSpec((1, n_pad), lambda i: (0, 0)),
                  pl.BlockSpec((1, n_pad), lambda i: (0, 0)),
                  pl.BlockSpec((1, n_pad), lambda i: (0, 0))],
        out_specs=pl.BlockSpec((tile_m, n_pad), lambda i: (i, 0)),
        compiler_params=_cparams(("parallel",)),
    )(y_pad, mean, var, g, bt)


def matmul_bias_bn_relu(x, w, b, gamma, beta, out_dtype=jnp.bfloat16):
    """Conv-as-matmul + BatchNorm2d (training batch stats) + ReLU."""
    m, k = x.shape
    n = w.shape[1]
    k_pad = _round_up(k, 128)
    n_pad = _round_up(n, 128)
    tile_m, grid_m, m_pad = _tiling(m, k_pad, n_pad)

    xp = _pad2(x.astype(jnp.bfloat16), m_pad, k_pad)
    wp = _pad2(w.astype(jnp.bfloat16), k_pad, n_pad)
    bp = _row_vec(b, n_pad)
    g = _row_vec(gamma, n_pad)
    bt = _row_vec(beta, n_pad)

    if grid_m == 1:
        # One launch: matmul + bias + exact stats + normalize + ReLU.
        out = pl.pallas_call(
            functools.partial(_mm_bn_relu_fused_kernel, m_real=m,
                              mask_rows=(m_pad != m)),
            out_shape=jax.ShapeDtypeStruct((m_pad, n_pad), out_dtype),
            grid=(1,),
            in_specs=[pl.BlockSpec((m_pad, k_pad), lambda i: (0, 0)),
                      pl.BlockSpec((k_pad, n_pad), lambda i: (0, 0)),
                      pl.BlockSpec((1, n_pad), lambda i: (0, 0)),
                      pl.BlockSpec((1, n_pad), lambda i: (0, 0)),
                      pl.BlockSpec((1, n_pad), lambda i: (0, 0))],
            out_specs=pl.BlockSpec((m_pad, n_pad), lambda i: (0, 0)),
            compiler_params=_cparams(("arbitrary",)),
        )(xp, wp, bp, g, bt)
        return out[:m, :n]

    # Large-M fallback: partial sums on a parallel grid + tiny XLA combine.
    y, ps, pss = pl.pallas_call(
        functools.partial(_mm_bias_partial_stats_kernel, m_real=m,
                          tile_m=tile_m, mask_rows=(m_pad != m)),
        out_shape=(jax.ShapeDtypeStruct((m_pad, n_pad), jnp.bfloat16),
                   jax.ShapeDtypeStruct((grid_m * 8, n_pad), jnp.float32),
                   jax.ShapeDtypeStruct((grid_m * 8, n_pad), jnp.float32)),
        grid=(grid_m,),
        in_specs=[pl.BlockSpec((tile_m, k_pad), lambda i: (i, 0)),
                  pl.BlockSpec((k_pad, n_pad), lambda i: (0, 0)),
                  pl.BlockSpec((1, n_pad), lambda i: (0, 0))],
        out_specs=(pl.BlockSpec((tile_m, n_pad), lambda i: (i, 0)),
                   pl.BlockSpec((8, n_pad), lambda i: (i, 0)),
                   pl.BlockSpec((8, n_pad), lambda i: (i, 0))),
        compiler_params=_cparams(("parallel",)),
    )(xp, wp, bp)
    inv_m = 1.0 / m
    mean = (ps.reshape(grid_m, 8, n_pad)[:, 0, :].sum(axis=0) * inv_m
            ).reshape(1, n_pad)
    ex2 = (pss.reshape(grid_m, 8, n_pad)[:, 0, :].sum(axis=0) * inv_m
           ).reshape(1, n_pad)
    var = ex2 - mean * mean
    out = _bn_relu_apply(y, mean, var, g, bt, tile_m, grid_m, out_dtype)
    return out[:m, :n]


def batchnorm_relu(y2d, gamma, beta, out_dtype=jnp.bfloat16):
    """BatchNorm (batch stats) + ReLU over a pre-formed (M, C) activation."""
    m, n = y2d.shape
    n_pad = _round_up(n, 128)
    tile_m, grid_m, m_pad = _tiling(m, n_pad, n_pad)
    yp = _pad2(y2d.astype(jnp.bfloat16), m_pad, n_pad)
    g = _row_vec(gamma, n_pad)
    bt = _row_vec(beta, n_pad)

    if grid_m == 1:
        out = pl.pallas_call(
            functools.partial(_bn_stats_relu_kernel, m_real=m),
            out_shape=jax.ShapeDtypeStruct((m_pad, n_pad), out_dtype),
            grid=(1,),
            in_specs=[pl.BlockSpec((m_pad, n_pad), lambda i: (0, 0)),
                      pl.BlockSpec((1, n_pad), lambda i: (0, 0)),
                      pl.BlockSpec((1, n_pad), lambda i: (0, 0))],
            out_specs=pl.BlockSpec((m_pad, n_pad), lambda i: (0, 0)),
            compiler_params=_cparams(("arbitrary",)),
        )(yp, g, bt)
        return out[:m, :n]

    ps, pss = pl.pallas_call(
        _partial_stats_kernel,
        out_shape=(jax.ShapeDtypeStruct((grid_m * 8, n_pad), jnp.float32),
                   jax.ShapeDtypeStruct((grid_m * 8, n_pad), jnp.float32)),
        grid=(grid_m,),
        in_specs=[pl.BlockSpec((tile_m, n_pad), lambda i: (i, 0))],
        out_specs=(pl.BlockSpec((8, n_pad), lambda i: (i, 0)),
                   pl.BlockSpec((8, n_pad), lambda i: (i, 0))),
        compiler_params=_cparams(("parallel",)),
    )(yp)
    inv_m = 1.0 / m
    mean = (ps.reshape(grid_m, 8, n_pad)[:, 0, :].sum(axis=0) * inv_m
            ).reshape(1, n_pad)
    ex2 = (pss.reshape(grid_m, 8, n_pad)[:, 0, :].sum(axis=0) * inv_m
           ).reshape(1, n_pad)
    var = ex2 - mean * mean
    out = _bn_relu_apply(yp, mean, var, g, bt, tile_m, grid_m, out_dtype)
    return out[:m, :n]


# --------------------------- im2col / layer glue ----------------------------
# TODO(synk): im2col still materializes the patch matrix in HBM via XLA glue;
# an in-kernel strided-DMA patch extraction would remove the k*k duplication.
def _im2col(x, k, s, p):
    # x: (B, H, W, C) NHWC -> (B*Ho*Wo, k*k*C), patch order (kh, kw, Cin)
    if p > 0:
        x = jnp.pad(x, ((0, 0), (p, p), (p, p), (0, 0)))
    b, h, w, c = x.shape
    ho = (h - k) // s + 1
    wo = (w - k) // s + 1
    patches = []
    for i in range(k):
        for j in range(k):
            patches.append(x[:, i:i + s * ho:s, j:j + s * wo:s, :])
    cols = jnp.stack(patches, axis=3)                # (B, Ho, Wo, k*k, C)
    return cols.reshape(b * ho * wo, k * k * c), b, ho, wo


def conv_bn_relu(x, layer, k, s, p):
    # Conv2d (weight (Cout, Cin, kh, kw)) + BatchNorm2d(train) + ReLU, fused.
    w = layer["w"]
    cout, cin = w.shape[0], w.shape[1]
    cols, b_, ho, wo = _im2col(x, k, s, p)
    w_mat = jnp.transpose(w, (2, 3, 1, 0)).reshape(k * k * cin, cout)
    out = matmul_bias_bn_relu(cols, w_mat, layer["b"],
                              layer["gamma"], layer["beta"])
    return out.reshape(b_, ho, wo, cout)


def conv_plain(x, layer, k, s, p, *, act="none", out_dtype=jnp.bfloat16):
    w = layer["w"]
    cout, cin = w.shape[0], w.shape[1]
    cols, b_, ho, wo = _im2col(x, k, s, p)
    w_mat = jnp.transpose(w, (2, 3, 1, 0)).reshape(k * k * cin, cout)
    y = matmul_bias_act(cols, w_mat, layer["b"], act=act, out_dtype=out_dtype)
    return y.reshape(b_, ho, wo, cout)


def conv_transpose_s1_bn_relu(x, layer, k, p):
    # ConvTranspose2d stride 1 == conv with spatially flipped kernel, pad k-1-p
    w = layer["w"]                                   # (Cin, Cout, kh, kw)
    cin, cout = w.shape[0], w.shape[1]
    w_conv = jnp.flip(w, axis=(2, 3))
    w_mat = jnp.transpose(w_conv, (2, 3, 0, 1)).reshape(k * k * cin, cout)
    cols, b_, ho, wo = _im2col(x, k, 1, k - 1 - p)
    out = matmul_bias_bn_relu(cols, w_mat, layer["b"],
                              layer["gamma"], layer["beta"])
    return out.reshape(b_, ho, wo, cout)


_TAPS = ((3, 1), (2, 0))   # _TAPS[out-parity][window_pos] -> tap (k=4, s=2, p=1)


def conv_transpose_s2(x, layer, *, act):
    # ConvTranspose2d(k=4, s=2, p=1) via the s^2 sub-convolution decomposition:
    # one stride-1 2x2 conv (pad 1) with the 4 phase sub-kernels stacked along
    # output channels, then crop-per-phase depth-to-space (stack + reshape,
    # lane-dense — no strided scatter).
    w = layer["w"]                                   # (Cin, Cout, 4, 4)
    bsz, h, wd, cin = x.shape
    cout = w.shape[1]

    cols, _, _, _ = _im2col(x, 2, 1, 1)              # (B*(H+1)*(W+1), 4*Cin)

    blocks = []
    for ry in range(2):
        for rx in range(2):
            sub = jnp.stack(
                [jnp.stack([w[:, :, _TAPS[ry][wy], _TAPS[rx][wx]]
                            for wx in range(2)], axis=0)
                 for wy in range(2)], axis=0)        # (wy, wx, Cin, Cout)
            blocks.append(sub.reshape(4 * cin, cout))
    w_mat = jnp.concatenate(blocks, axis=1)          # (4*Cin, 4*Cout)
    b4 = jnp.tile(layer["b"], 4)

    mm_act = "sigmoid" if act == "sigmoid" else "none"
    out_dt = jnp.float32 if act == "none" else jnp.bfloat16
    y = matmul_bias_act(cols, w_mat, b4, act=mm_act, out_dtype=out_dt)
    y = y.reshape(bsz, h + 1, wd + 1, 4, cout)

    # depth-to-space: out[:, 2i+ry, 2j+rx, :] = y[:, i+ry, j+rx, 2*ry+rx, :]
    rows = []
    for ry in range(2):
        rows.append(jnp.stack([y[:, ry:ry + h, rx:rx + wd, 2 * ry + rx, :]
                               for rx in range(2)], axis=3))   # (B, h, w, 2, C)
    out = jnp.stack(rows, axis=2).reshape(bsz, 2 * h, 2 * wd, cout)

    if act == "bn_relu":
        m = bsz * 2 * h * 2 * wd
        out2 = batchnorm_relu(out.reshape(m, cout), layer["gamma"], layer["beta"])
        return out2.reshape(bsz, 2 * h, 2 * wd, cout)
    return out


def _ref_conv_transpose_s2(x_nhwc, w, b):
    # ConvTranspose2d(k=4, s=2, p=1) reference: dilated conv w/ flipped kernel.
    w_hwio = jnp.transpose(jnp.flip(w, axis=(2, 3)), (2, 3, 0, 1))  # (kh,kw,Ci,Co)
    y = jax.lax.conv_general_dilated(
        x_nhwc.astype(jnp.bfloat16), w_hwio.astype(jnp.bfloat16),
        window_strides=(1, 1), padding=((2, 2), (2, 2)),
        lhs_dilation=(2, 2), rhs_dilation=(1, 1),
        dimension_numbers=("NHWC", "HWIO", "NHWC"),
        preferred_element_type=jnp.float32)
    return y + b.astype(jnp.float32)


# ------------------------- Generator (synthetic params) ---------------------
def init_params(key, o_dim, h_dim, z_dim):
    keys = jax.random.split(key, 16)

    def rnd(k, shape):
        return jax.random.normal(k, shape, jnp.float32) * 0.05

    enc_ch = [(o_dim, h_dim), (h_dim, 2 * h_dim),
              (2 * h_dim, 4 * h_dim), (4 * h_dim, 4 * h_dim)]
    enc = []
    for li, (ci, co) in enumerate(enc_ch):
        enc.append(dict(w=rnd(keys[2 * li], (co, ci, 4, 4)),
                        b=rnd(keys[2 * li + 1], (co,)),
                        gamma=jnp.ones((co,), jnp.float32),
                        beta=jnp.zeros((co,), jnp.float32)))

    dec_ch = [(4 * h_dim + z_dim, 4 * h_dim), (4 * h_dim, 2 * h_dim),
              (2 * h_dim, h_dim), (h_dim, o_dim)]
    dec = []
    for li, (ci, co) in enumerate(dec_ch):
        dec.append(dict(w=rnd(keys[8 + 2 * li], (ci, co, 4, 4)),
                        b=rnd(keys[8 + 2 * li + 1], (co,)),
                        gamma=jnp.ones((co,), jnp.float32),
                        beta=jnp.zeros((co,), jnp.float32)))
    return dict(enc=enc, dec=dec)


def generator_forward(params, x_nchw, z):
    # x_nchw: (B, o_dim, 32, 32), z: (B, z_dim)  ->  (B, o_dim, 32, 32)
    x = jnp.transpose(x_nchw, (0, 2, 3, 1)).astype(jnp.bfloat16)   # NCHW -> NHWC
    bsz = x.shape[0]
    enc = params["enc"]

    h = conv_bn_relu(x, enc[0], 4, 2, 1)                 # 32 -> 16
    h = conv_bn_relu(h, enc[1], 4, 2, 1)                 # 16 -> 8
    h = conv_bn_relu(h, enc[2], 4, 2, 1)                 # 8  -> 4
    h = conv_plain(h, enc[3], 4, 1, 0)                   # 4  -> 1

    o = h.reshape(bsz, -1)
    o = jnp.concatenate([o, z.astype(o.dtype)], axis=1)
    h = o.reshape(bsz, 1, 1, -1)

    dec = params["dec"]
    h = conv_transpose_s1_bn_relu(h, dec[0], 4, 0)       # 1  -> 4
    h = conv_transpose_s2(h, dec[1], act="bn_relu")      # 4  -> 8
    h = conv_transpose_s2(h, dec[2], act="bn_relu")      # 8  -> 16
    h = conv_transpose_s2(h, dec[3], act="sigmoid")      # 16 -> 32

    return jnp.transpose(h, (0, 3, 1, 2)).astype(jnp.float32)      # NHWC -> NCHW


if __name__ == "__main__":
    key = jax.random.PRNGKey(0)
    kx, kz, kp = jax.random.split(key, 3)

    # --- numerical self-check of the ConvTranspose2d(4,2,1) decomposition ---
    kw1, kb1, kxt = jax.random.split(jax.random.PRNGKey(1), 3)
    w_t = jax.random.normal(kw1, (8, 5, 4, 4), jnp.float32) * 0.1
    b_t = jax.random.normal(kb1, (5,), jnp.float32) * 0.1
    x_t = jax.random.normal(kxt, (2, 6, 6, 8), jnp.float32)
    got = conv_transpose_s2(x_t.astype(jnp.bfloat16), dict(w=w_t, b=b_t),
                            act="none")
    ref = _ref_conv_transpose_s2(x_t, w_t, b_t)
    assert got.shape == ref.shape == (2, 12, 12, 5), (got.shape, ref.shape)
    err = float(jnp.max(jnp.abs(got.astype(jnp.float32) - ref)))
    assert err < 5e-2, f"conv_transpose_s2 decomposition mismatch: {err}"

    # --- full Generator forward ---
    # spatial must be 32 so the encoder bottleneck is 1x1 (32->16->8->4->1)
    B, o_dim, h_dim, z_dim = 2, 3, 8, 4
    x = jax.random.normal(kx, (B, o_dim, 32, 32), jnp.float32)
    z = jax.random.normal(kz, (B, z_dim), jnp.float32)
    params = init_params(kp, o_dim, h_dim, z_dim)

    out = jax.jit(generator_forward)(params, x, z)
    jax.block_until_ready(out)
    assert out.shape == (B, o_dim, 32, 32), out.shape
    assert bool(jnp.all((out >= 0.0) & (out <= 1.0)))   # sigmoid output range
    print("KERNEL_OK")
</pallas_src>

<mosaic_0001>
module attributes {stable_mosaic.version = 11 : i64} {
  func.func @_mm_bias_act_kernel(%arg0: i32, %arg1: memref<112x128xbf16, #tpu.memory_space<vmem>>, %arg2: memref<128x128xbf16, #tpu.memory_space<vmem>>, %arg3: memref<1x128xf32, #tpu.memory_space<vmem>>, %arg4: memref<112x128xf32, #tpu.memory_space<vmem>>) attributes {dimension_semantics = [#tpu.dimension_semantics<parallel>], iteration_bounds = array<i64: 1>, scalar_prefetch = 0 : i64, scratch_operands = 0 : i64, tpu.core_type = #tpu.core_type<tc>, window_params = [{transform_indices = @transform_0, window_bounds = array<i64: 112, 128>}, {pipeline_mode = #tpu.pipeline_mode<synchronous>, transform_indices = @transform_1, window_bounds = array<i64: 128, 128>}, {pipeline_mode = #tpu.pipeline_mode<synchronous>, transform_indices = @transform_2, window_bounds = array<i64: 1, 128>}, {transform_indices = @transform_3, window_bounds = array<i64: 112, 128>}]} {
    %c0 = arith.constant 0 : index
    %c0_0 = arith.constant 0 : index
    %0 = vector.load %arg1[%c0, %c0_0] : memref<112x128xbf16, #tpu.memory_space<vmem>>, vector<112x128xbf16>
    %c0_1 = arith.constant 0 : index
    %c0_2 = arith.constant 0 : index
    %1 = vector.load %arg2[%c0_1, %c0_2] : memref<128x128xbf16, #tpu.memory_space<vmem>>, vector<128x128xbf16>
    %cst = arith.constant dense<0.000000e+00> : vector<112x128xf32>
    %2 = tpu.matmul %0, %1, %cst {dimension_numbers = #tpu.dot_dimension_numbers<[1], [0], [0], [1], [0, 0, 1, 1], [], []>} : vector<112x128xbf16>, vector<128x128xbf16>, vector<112x128xf32> -> vector<112x128xf32>
    %c0_3 = arith.constant 0 : index
    %c0_4 = arith.constant 0 : index
    %3 = vector.load %arg3[%c0_3, %c0_4] : memref<1x128xf32, #tpu.memory_space<vmem>>, vector<1x128xf32>
    %4 = vector.broadcast %3 : vector<1x128xf32> to vector<112x128xf32>
    %5 = arith.addf %2, %4 : vector<112x128xf32>
    %c0_5 = arith.constant 0 : index
    %c0_6 = arith.constant 0 : index
    %6 = vector.load %arg4[%c0_5, %c0_6] : memref<112x128xf32, #tpu.memory_space<vmem>>, vector<112x128xf32>
    tpu.vector_store %arg4[%c0_5, %c0_6], %5 {strides = array<i32>} : memref<112x128xf32, #tpu.memory_space<vmem>>, vector<112x128xf32>,
    return
  }
  func.func @transform_0(%arg0: i32) -> (i32, i32) {
    %c0_i32 = arith.constant 0 : i32
    %c0_i32_0 = arith.constant 0 : i32
    return %arg0, %c0_i32 : i32, i32
  }
  func.func @transform_1(%arg0: i32) -> (i32, i32) {
    %c0_i32 = arith.constant 0 : i32
    %c0_i32_0 = arith.constant 0 : i32
    %c0_i32_1 = arith.constant 0 : i32
    return %c0_i32, %c0_i32_0 : i32, i32
  }
  func.func @transform_2(%arg0: i32) -> (i32, i32) {
    %c0_i32 = arith.constant 0 : i32
    %c0_i32_0 = arith.constant 0 : i32
    %c0_i32_1 = arith.constant 0 : i32
    return %c0_i32, %c0_i32_0 : i32, i32
  }
  func.func @transform_3(%arg0: i32) -> (i32, i32) {
    %c0_i32 = arith.constant 0 : i32
    %c0_i32_0 = arith.constant 0 : i32
    return %arg0, %c0_i32 : i32, i32
  }
}

</mosaic_0001>

<llo_original>
// kernel: tpu_custom_call.1
$region0: #{tpu_custom_call.1}
  #allocation0 [shape = 'u32[]', space=smem, size = 0x4, offset = 0x4, fixed_abs, tag = 'smem constant byte address 0x4 - core index']
  #allocation1 [shape = 'u32[144,128]{1,0:T(1,128)}', space=vmem, size = 0x12000, scoped, tag = 'internal scratch']
  %s0 = inlined_call_operand.hbm [shape: bf16[112,128], index: 0, kind: input, shape index: {}]
  %s1 = inlined_call_operand.hbm [shape: bf16[128,128], index: 1, kind: input, shape index: {}]
  %s2 = inlined_call_operand.hbm [shape: f32[1,128], index: 2, kind: input, shape index: {}]
  %s3 = inlined_call_operand.hbm [shape: f32[112,128], index: 3, kind: output, shape index: {}]
  %s4 = sld [smem:[#allocation0]]
  $region34: #{tpu_custom_call.1} parent=0
    _
  %s6 = ssub.s32 1, %s4
  %s7 = scalar_select 0, %s6, %s4
  $region1: #{tpu_custom_call.1} parent=0
    #allocation2 [shape = 'u8[28672]{0}', space=vmem, size = 0x7000, scoped, tag = 'input window, operand 0, single buffered']
    #allocation3 [shape = 's32[1]{0}', space=sflag, size = 0x4, scoped, tag = 'scoped memory for tpu_custom_call.1']
    #allocation4 [shape = 's32[1]{0}', space=sflag, size = 0x4, scoped, tag = 'scoped memory for tpu_custom_call.1']
    #allocation5 [shape = 'u8[32768]{0}', space=vmem, size = 0x8000, scoped, tag = 'input window, operand 1, single buffered']
    #allocation6 [shape = 's32[1]{0}', space=sflag, size = 0x4, scoped, tag = 'scoped memory for tpu_custom_call.1']
    #allocation7 [shape = 'u8[512]{0}', space=vmem, size = 0x400, scoped, tag = 'input window, operand 2, single buffered']
    #allocation8 [shape = 'u8[57344]{0}', space=vmem, size = 0xe000, scoped, tag = 'output window, operand 0, single buffered']
    %8 = vsyncpa [#allocation3], 0
    %9 = vsyncpa [#allocation6], 0
    %10 = vsyncpa [#allocation4], 0
    // Predicated region
    $region2: #{tpu_custom_call.1} parent=1 // pred_check
      _
    $region3: #{tpu_custom_call.1} parent=1 // pred_check_branch
      %12 = sbr.rel (0) target = $region5
    $region4: #{tpu_custom_call.1} parent=1 // pred_region
      %s14 = ssub.s32 896, 896
      %15 = vsyncadd [#allocation3], %s14
      %s16 = sshll.u32 [#allocation2], 4
      %s17 = int_to_ptr.vmem [resolvable:$true] %s16
      %22 = dma.hbm_to_vmem [thread:$0]  %s0, 896, %s17, [#allocation3], 64, 64, 4
    $region5: #{tpu_custom_call.1} parent=1 // pred_fallthru
      _
    // Predicated region
    $region6: #{tpu_custom_call.1} parent=1 // pred_check
      _
    $region7: #{tpu_custom_call.1} parent=1 // pred_check_branch
      %24 = sbr.rel (0) target = $region9
    $region8: #{tpu_custom_call.1} parent=1 // pred_region
      %s26 = ssub.s32 1024, 1024
      %27 = vsyncadd [#allocation6], %s26
      %s28 = sshll.u32 [#allocation5], 4
      %s29 = int_to_ptr.vmem [resolvable:$true] %s28
      %34 = dma.hbm_to_vmem [thread:$0]  %s1, 1024, %s29, [#allocation6], 64, 64, 4
    $region9: #{tpu_custom_call.1} parent=1 // pred_fallthru
      _
    // Predicated region
    $region10: #{tpu_custom_call.1} parent=1 // pred_check
      _
    $region11: #{tpu_custom_call.1} parent=1 // pred_check_branch
      %36 = sbr.rel (0) target = $region13
    $region12: #{tpu_custom_call.1} parent=1 // pred_region
      %s38 = ssub.s32 16, 16
      %39 = vsyncadd [#allocation6], %s38
      %s41 = sshll.u32 [#allocation7], 4
      %s42 = int_to_ptr.vmem [resolvable:$true] %s41
      %44 = dma.hbm_to_vmem [thread:$0]  %s2, 16, %s42, [#allocation6]
    $region13: #{tpu_custom_call.1} parent=1 // pred_fallthru
      _
    // Predicated region
    $region14: #{tpu_custom_call.1} parent=1 // pred_check
      _
    $region15: #{tpu_custom_call.1} parent=1 // pred_check_branch
      %46 = sbr.rel (0) target = $region17
    $region16: #{tpu_custom_call.1} parent=1 // pred_region
      %47 = dma.done [#allocation3], 896
    $region17: #{tpu_custom_call.1} parent=1 // pred_fallthru
      _
    // Predicated region
    $region18: #{tpu_custom_call.1} parent=1 // pred_check
      _
    $region19: #{tpu_custom_call.1} parent=1 // pred_check_branch
      %49 = sbr.rel (0) target = $region21
    $region20: #{tpu_custom_call.1} parent=1 // pred_region
      %50 = dma.done [#allocation6], 1024
    $region21: #{tpu_custom_call.1} parent=1 // pred_fallthru
      _
    // Predicated region
    $region22: #{tpu_custom_call.1} parent=1 // pred_check
      _
    $region23: #{tpu_custom_call.1} parent=1 // pred_check_branch
      %52 = sbr.rel (0) target = $region25
    $region24: #{tpu_custom_call.1} parent=1 // pred_region
      %53 = dma.done [#allocation6], 16
    $region25: #{tpu_custom_call.1} parent=1 // pred_fallthru
      _
    %v55 = vld [vmem:[#allocation2] sm:$0xf]
    %v56 = vld [vmem:[#allocation2 + $0x4] sm:$0xf]
    %v57 = vld [vmem:[#allocation2 + $0x8] sm:$0xf]
    %v58 = vld [vmem:[#allocation2 + $0xc] sm:$0xf]
    %v59 = vld [vmem:[#allocation2 + $0x10] sm:$0xf]
    %v60 = vld [vmem:[#allocation2 + $0x14] sm:$0xf]
    %v61 = vld [vmem:[#allocation2 + $0x18] sm:$0xf]
    %v62 = vld [vmem:[#allocation2 + $0x1c] sm:$0xf]
    %v63 = vld [vmem:[#allocation2 + $0x20] sm:$0xf]
    %v64 = vld [vmem:[#allocation2 + $0x24] sm:$0xf]
    %v65 = vld [vmem:[#allocation2 + $0x28] sm:$0xf]
    %v66 = vld [vmem:[#allocation2 + $0x2c] sm:$0xf]
    %v67 = vld [vmem:[#allocation2 + $0x30] sm:$0xf]
    %v68 = vld [vmem:[#allocation2 + $0x34] sm:$0xf]
    %v69 = vld [vmem:[#allocation5] sm:$0xf]
    %v70 = vld [vmem:[#allocation5 + $0x4] sm:$0xf]
    %v71 = vld [vmem:[#allocation5 + $0x8] sm:$0xf]
    %v72 = vld [vmem:[#allocation5 + $0xc] sm:$0xf]
    %v73 = vld [vmem:[#allocation5 + $0x10] sm:$0xf]
    %v74 = vld [vmem:[#allocation5 + $0x14] sm:$0xf]
    %v75 = vld [vmem:[#allocation5 + $0x18] sm:$0xf]
    %v76 = vld [vmem:[#allocation5 + $0x1c] sm:$0xf]
    %v77 = vld [vmem:[#allocation5 + $0x20] sm:$0xf]
    %v78 = vld [vmem:[#allocation5 + $0x24] sm:$0xf]
    %v79 = vld [vmem:[#allocation5 + $0x28] sm:$0xf]
    %v80 = vld [vmem:[#allocation5 + $0x2c] sm:$0xf]
    %v81 = vld [vmem:[#allocation5 + $0x30] sm:$0xf]
    %v82 = vld [vmem:[#allocation5 + $0x34] sm:$0xf]
    %v83 = vld [vmem:[#allocation5 + $0x38] sm:$0xf]
    %v84 = vld [vmem:[#allocation5 + $0x3c] sm:$0xf]
    %v85 = vld [vmem:[#allocation7] sm:$0x1]
    %v87 = vlaneseq
    %v88 = vshrl.u32 %v87, 7
    %v89 = vsub.s32 0, %v88
    %v90 = vrot.slane %v85, %v89
    %v106 = vunpack.c.l.b16 %v55
    %v107 = vunpack.c.l.b16 %v56
    %v108 = vunpack.c.l.b16 %v57
    %v109 = vunpack.c.l.b16 %v58
    %v110 = vunpack.c.l.b16 %v59
    %v111 = vunpack.c.l.b16 %v60
    %v112 = vunpack.c.l.b16 %v61
    %v113 = vunpack.c.l.b16 %v62
    %v114 = vunpack.c.l.b16 %v63
    %v115 = vunpack.c.l.b16 %v64
    %v116 = vunpack.c.l.b16 %v65
    %v117 = vunpack.c.l.b16 %v66
    %v118 = vunpack.c.l.b16 %v67
    %v119 = vunpack.c.l.b16 %v68
    %v120 = vpack.c.b16 %v107, %v106
    %v121 = vpack.c.b16 %v109, %v108
    %v122 = vpack.c.b16 %v111, %v110
    %v123 = vpack.c.b16 %v113, %v112
    %v124 = vpack.c.b16 %v115, %v114
    %v125 = vpack.c.b16 %v117, %v116
    %v126 = vpack.c.b16 %v119, %v118
    %v150 = vunpack.c.l.b16 %v69
    %v151 = vunpack.c.l.b16 %v70
    %v152 = vunpack.c.l.b16 %v71
    %v153 = vunpack.c.l.b16 %v72
    %v154 = vunpack.c.l.b16 %v73
    %v155 = vunpack.c.l.b16 %v74
    %v156 = vunpack.c.l.b16 %v75
    %v157 = vunpack.c.l.b16 %v76
    %v158 = vunpack.c.l.b16 %v77
    %v159 = vunpack.c.l.b16 %v78
    %v160 = vunpack.c.l.b16 %v79
    %v161 = vunpack.c.l.b16 %v80
    %v162 = vunpack.c.l.b16 %v81
    %v163 = vunpack.c.l.b16 %v82
    %v164 = vunpack.c.l.b16 %v83
    %v165 = vunpack.c.l.b16 %v84
    %v166 = vpack.c.b16 %v151, %v150
    %v167 = vpack.c.b16 %v153, %v152
    %v168 = vpack.c.b16 %v155, %v154
    %v169 = vpack.c.b16 %v157, %v156
    %v170 = vpack.c.b16 %v159, %v158
    %v171 = vpack.c.b16 %v161, %v160
    %v172 = vpack.c.b16 %v163, %v162
    %v173 = vpack.c.b16 %v165, %v164
    %182 = vmatprep.subr.bf16.mxu0 0
    %183 = vmatpush1.bf16.msra.mxu0 %v166
    %184 = vmatprep.subr.bf16.mxu0 0
    %185 = vmatpush1.bf16.msra.mxu0 %v167
    %186 = vmatprep.subr.bf16.mxu0 0
    %187 = vmatpush1.bf16.msra.mxu0 %v168
    %188 = vmatprep.subr.bf16.mxu0 0
    %189 = vmatpush1.bf16.msra.mxu0 %v169
    %190 = vmatprep.subr.bf16.mxu0 0
    %191 = vmatpush1.bf16.msra.mxu0 %v170
    %192 = vmatprep.subr.bf16.mxu0 0
    %193 = vmatpush1.bf16.msra.mxu0 %v171
    %194 = vmatprep.subr.bf16.mxu0 0
    %195 = vmatpush1.bf16.msra.mxu0 %v172
    %196 = vmatprep.subr.bf16.mxu0 0
    %197 = vmatpush1.bf16.msra.mxu0 %v173
    %198 = vmatprep.subr.bf16.mxu0 0
    %199 = vmatpush1.bf16.msra.mxu0 0
    %200 = vmatprep.subr.bf16.mxu0 0
    %201 = vmatpush1.bf16.msra.mxu0 0
    %202 = vmatprep.subr.bf16.mxu0 0
    %203 = vmatpush1.bf16.msra.mxu0 0
    %204 = vmatprep.subr.bf16.mxu0 0
    %205 = vmatpush1.bf16.msra.mxu0 0
    %206 = vmatprep.subr.bf16.mxu0 0
    %207 = vmatpush1.bf16.msra.mxu0 0
    %208 = vmatprep.subr.bf16.mxu0 0
    %209 = vmatpush1.bf16.msra.mxu0 0
    %210 = vmatprep.subr.bf16.mxu0 0
    %211 = vmatpush1.bf16.msra.mxu0 0
    %212 = vmatprep.subr.bf16.mxu0 0
    %213 = vmatpush1.bf16.msra.mxu0 0
    %214 = vmatprep.mubr.bf16.mxu0 0
    %215 = vmatmul.mubr.bf16.gmra.mrb[0].mxu0 %v120
    %v216 = vpop.f32.mrb[0].mxu0
    %v217 = vadd.f32 %v90, %v216
    %v218 = vpop.f32.mrb[0].mxu0
    %v219 = vpop.f32.mrb[0].mxu0
    %v220 = vadd.f32 %v90, %v219
    %v221 = vpop.f32.mrb[0].mxu0
    %222 = vmatprep.mubr.bf16.mxu0 0
    %223 = vmatmul.mubr.bf16.gmra.mrb[0].mxu0 %v121
    %v224 = vpop.f32.mrb[0].mxu0
    %v225 = vadd.f32 %v90, %v224
    %v226 = vpop.f32.mrb[0].mxu0
    %v227 = vpop.f32.mrb[0].mxu0
    %v228 = vadd.f32 %v90, %v227
    %v229 = vpop.f32.mrb[0].mxu0
    %230 = vmatprep.mubr.bf16.mxu0 0
    %231 = vmatmul.mubr.bf16.gmra.mrb[0].mxu0 %v122
    %v232 = vpop.f32.mrb[0].mxu0
    %v233 = vadd.f32 %v90, %v232
    %v234 = vpop.f32.mrb[0].mxu0
    %v235 = vpop.f32.mrb[0].mxu0
    %v236 = vadd.f32 %v90, %v235
    %v237 = vpop.f32.mrb[0].mxu0
    %238 = vmatprep.mubr.bf16.mxu0 0
    %239 = vmatmul.mubr.bf16.gmra.mrb[0].mxu0 %v123
    %v240 = vpop.f32.mrb[0].mxu0
    %v241 = vadd.f32 %v90, %v240
    %v242 = vpop.f32.mrb[0].mxu0
    %v243 = vpop.f32.mrb[0].mxu0
    %v244 = vadd.f32 %v90, %v243
    %v245 = vpop.f32.mrb[0].mxu0
    %246 = vmatprep.mubr.bf16.mxu0 0
    %247 = vmatmul.mubr.bf16.gmra.mrb[0].mxu0 %v124
    %v248 = vpop.f32.mrb[0].mxu0
    %v249 = vadd.f32 %v90, %v248
    %v250 = vpop.f32.mrb[0].mxu0
    %v251 = vpop.f32.mrb[0].mxu0
    %v252 = vadd.f32 %v90, %v251
    %v253 = vpop.f32.mrb[0].mxu0
    %254 = vmatprep.mubr.bf16.mxu0 0
    %255 = vmatmul.mubr.bf16.gmra.mrb[0].mxu0 %v125
    %v256 = vpop.f32.mrb[0].mxu0
    %v257 = vadd.f32 %v90, %v256
    %v258 = vpop.f32.mrb[0].mxu0
    %v259 = vpop.f32.mrb[0].mxu0
    %v260 = vadd.f32 %v90, %v259
    %v261 = vpop.f32.mrb[0].mxu0
    %262 = vmatprep.mubr.bf16.mxu0 0
    %263 = vmatmul.mubr.bf16.gmra.mrb[0].mxu0 %v126
    %v264 = vpop.f32.mrb[0].mxu0
    %v265 = vadd.f32 %v90, %v264
    %v266 = vpop.f32.mrb[0].mxu0
    %v267 = vpop.f32.mrb[0].mxu0
    %v268 = vadd.f32 %v90, %v267
    %v269 = vpop.f32.mrb[0].mxu0
    %270 = vdwg.mxu0
    %271 = vst [vmem:[#allocation8] sm:$0xff] %v217
    %272 = vst [vmem:[#allocation8 + $0x8] sm:$0xff] %v220
    %273 = vst [vmem:[#allocation8 + $0x10] sm:$0xff] %v225
    %274 = vst [vmem:[#allocation8 + $0x18] sm:$0xff] %v228
    %275 = vst [vmem:[#allocation8 + $0x20] sm:$0xff] %v233
    %276 = vst [vmem:[#allocation8 + $0x28] sm:$0xff] %v236
    %277 = vst [vmem:[#allocation8 + $0x30] sm:$0xff] %v241
    %278 = vst [vmem:[#allocation8 + $0x38] sm:$0xff] %v244
    %279 = vst [vmem:[#allocation8 + $0x40] sm:$0xff] %v249
    %280 = vst [vmem:[#allocation8 + $0x48] sm:$0xff] %v252
    %281 = vst [vmem:[#allocation8 + $0x50] sm:$0xff] %v257
    %282 = vst [vmem:[#allocation8 + $0x58] sm:$0xff] %v260
    %283 = vst [vmem:[#allocation8 + $0x60] sm:$0xff] %v265
    %284 = vst [vmem:[#allocation8 + $0x68] sm:$0xff] %v268
    // Predicated region
    $region26: #{tpu_custom_call.1} parent=1 // pred_check
      _
    $region27: #{tpu_custom_call.1} parent=1 // pred_check_branch
      %286 = sbr.rel (0) target = $region29
    $region28: #{tpu_custom_call.1} parent=1 // pred_region
      %s288 = ssub.s32 1792, 1792
      %289 = vsyncadd [#allocation4], %s288
      %s290 = sshll.u32 [#allocation8], 4
      %s291 = int_to_ptr.vmem [resolvable:$true] %s290
      %296 = dma.vmem_to_hbm [thread:$0]  %s291, 1792, %s3, [#allocation4], 128, 128, 8
    $region29: #{tpu_custom_call.1} parent=1 // pred_fallthru
      _
    // Predicated region
    $region30: #{tpu_custom_call.1} parent=1 // pred_check
      _
    $region31: #{tpu_custom_call.1} parent=1 // pred_check_branch
      %298 = sbr.rel (0) target = $region33
    $region32: #{tpu_custom_call.1} parent=1 // pred_region
      %299 = dma.done [#allocation4], 1792
    $region33: #{tpu_custom_call.1} parent=1 // pred_fallthru
      _
    %300 = vsyncpa [#allocation3], 1
    %301 = vsyncpa [#allocation6], 1
    %302 = vsyncpa [#allocation4], 1

</llo_original>
